<compile_context>
chip_gen: v5e
topology: v5e:2x2
jax: 0.10.0
libtpu: 0.0.40
codegen_flags: <defaults>
</compile_context>

<pallas_src>
import functools

import jax
import jax.numpy as jnp
from jax.experimental import pallas as pl
from jax.experimental.pallas import tpu as pltpu


def _round_up(n, m):
    return (n + m - 1) // m * m


def _im2col_3x3(x):
    """x: (B, C, H, W) -> patches (B*H*W, C*9).

    Flattening order of the last axis matches
    torch_weight.reshape(C_out, C_in*9): C_in outer, (kh, kw) row-major inner.
    """
    B, C, H, W = x.shape
    xp = jnp.pad(x, ((0, 0), (0, 0), (1, 1), (1, 1)))
    taps = []
    for dh in range(3):
        for dw in range(3):
            taps.append(xp[:, :, dh:dh + H, dw:dw + W])
    p = jnp.stack(taps, axis=2)                # (B, C, 9, H, W)
    p = jnp.transpose(p, (0, 3, 4, 1, 2))      # (B, H, W, C, 9)
    return p.reshape(B * H * W, C * 9)


def _ensemble_subnet_kernel(patches_ref, wc_ref, bc_ref, wfct_ref, bfc_ref,
                            out_ref, pooled_ref, *, hw, ensemble_num,
                            tile_rows, need_mask):
    """Grid = (B, n_row_tiles). Streams conv-as-matmul tiles, accumulates the
    per-image channel sum, and on the last row-tile runs the fused ensemble
    classifier (single matmul over the covered channel range, mean scaling)."""
    j = pl.program_id(1)
    n_j = pl.num_programs(1)

    @pl.when(j == 0)
    def _():
        pooled_ref[...] = jnp.zeros_like(pooled_ref)

    # conv3x3 as matmul over im2col patches (MXU), bias + ReLU on VPU (f32).
    acts = jnp.dot(patches_ref[...], wc_ref[...],
                   preferred_element_type=jnp.float32)          # (tile, Np)
    acts = jnp.maximum(acts + bc_ref[...], 0.0)

    if need_mask:
        # Zero out rows that are spatial padding (HW not a multiple of the
        # row tile) so they do not pollute the average pool.
        row = j * tile_rows + jax.lax.broadcasted_iota(
            jnp.int32, (tile_rows, 1), 0)
        acts = jnp.where(row < hw, acts, 0.0)

    # Running channel-sum for the global average pool of this image.
    pooled_ref[0:1, :] += jnp.sum(acts, axis=0, keepdims=True)

    @pl.when(j == n_j - 1)
    def _():
        h = (pooled_ref[0:1, :] * (1.0 / hw)).astype(wfct_ref.dtype)  # (1, Np)
        # Mean over the ensemble of shifted-slice subnet classifiers.  The
        # per-shift channel slices are contiguous and disjoint, so the sum of
        # per-slice matmuls equals one matmul over the covered range.
        logits = jnp.dot(h, wfct_ref[...],
                         preferred_element_type=jnp.float32)     # (1, NCp)
        logits = logits * (1.0 / ensemble_num) + bfc_ref[...]
        out_ref[...] = jnp.broadcast_to(
            logits[:, None, :], out_ref.shape).astype(out_ref.dtype)


def ensemble_subnet_forward(x, params, *, subnet_ratio=0.25, ensemble_num=-1,
                            shift_idx=0, row_tile=512):
    """Pallas implementation of EnsembleSubnet.forward(x) (mean reduction)."""
    wc, bc, wfc, bfc = (params["conv_w"], params["conv_b"],
                        params["fc_w"], params["fc_b"])
    B, C, H, W = x.shape
    ch_full = wc.shape[0]
    num_classes = wfc.shape[0]
    if ensemble_num < 0:
        ensemble_num = int(1.0 / subnet_ratio)
    # TODO(synk): verify rounding against the SlimmableMixin width computation
    # (e.g. make_divisible-style rounding) for non-trivial ratios.
    sub_ch = int(round(ch_full * subnet_ratio))

    lo = shift_idx * sub_ch
    n_cov = ensemble_num * sub_ch
    hi = lo + n_cov
    # torch.narrow would error on out-of-range slices; JAX slicing would
    # silently clamp, so check explicitly.
    assert hi <= ch_full, (
        f"ensemble channel range [{lo}:{hi}] exceeds full width {ch_full}")

    HW = H * W
    K = C * 9
    Kp = _round_up(K, 128)                 # lane-pad contraction dim
    Np = _round_up(n_cov, 128)             # lane-pad covered conv channels
    NCp = _round_up(num_classes, 128)      # lane-pad classifier output

    # Row tiling of the per-image patch rows.
    tile_rows = _round_up(max(8, min(row_tile, _round_up(HW, 8))), 8)
    HWp = _round_up(HW, tile_rows)
    n_tiles = HWp // tile_rows
    need_mask = (HWp != HW)

    # ---- glue: im2col, channel-range slicing, zero padding, bf16 casts ----
    patches = _im2col_3x3(x.astype(jnp.float32)).reshape(B, HW, K)
    patches = jnp.pad(patches, ((0, 0), (0, HWp - HW), (0, Kp - K)))
    patches = patches.reshape(B * HWp, Kp).astype(jnp.bfloat16)

    # Only the conv output channels the ensemble actually uses [lo:hi].
    wc_k = wc[lo:hi].reshape(n_cov, K).T                            # (K, n_cov)
    wc_k = jnp.pad(wc_k, ((0, Kp - K), (0, Np - n_cov))).astype(jnp.bfloat16)
    bc2 = jnp.pad(bc[lo:hi].reshape(1, n_cov),
                  ((0, 0), (0, Np - n_cov))).astype(jnp.float32)

    wfc_t = wfc[:, lo:hi].T                                         # (n_cov, NC)
    wfc_t = jnp.pad(wfc_t, ((0, Np - n_cov),
                            (0, NCp - num_classes))).astype(jnp.bfloat16)
    bfc2 = jnp.pad(bfc.reshape(1, num_classes),
                   ((0, 0), (0, NCp - num_classes))).astype(jnp.float32)

    kernel = functools.partial(
        _ensemble_subnet_kernel, hw=HW, ensemble_num=ensemble_num,
        tile_rows=tile_rows, need_mask=need_mask)

    out = pl.pallas_call(
        kernel,
        out_shape=jax.ShapeDtypeStruct((B, 8, NCp), jnp.float32),
        grid_spec=pltpu.PrefetchScalarGridSpec(
            num_scalar_prefetch=0,
            grid=(B, n_tiles),
            in_specs=[
                # streamed, double-buffered patch row tiles
                pl.BlockSpec((tile_rows, Kp), lambda b, j: (b * n_tiles + j, 0)),
                # weights/biases: grid-invariant blocks stay resident in VMEM
                pl.BlockSpec((Kp, Np), lambda b, j: (0, 0)),
                pl.BlockSpec((1, Np), lambda b, j: (0, 0)),
                pl.BlockSpec((Np, NCp), lambda b, j: (0, 0)),
                pl.BlockSpec((1, NCp), lambda b, j: (0, 0)),
            ],
            out_specs=pl.BlockSpec((1, 8, NCp), lambda b, j: (b, 0, 0)),
            scratch_shapes=[pltpu.VMEM((8, Np), jnp.float32)],
        ),
        compiler_params=pltpu.CompilerParams(
            dimension_semantics=("parallel", "arbitrary"),
            vmem_limit_bytes=32 * 1024 * 1024),
    )(patches, wc_k, bc2, wfc_t, bfc2)

    # Strip lane/sublane padding.
    return out[:, 0, :num_classes]


def ensemble_subnet_reference(x, params, *, subnet_ratio=0.25, ensemble_num=-1,
                              shift_idx=0):
    """Pure-JAX f32 reference following the PyTorch loop literally (per-subnet
    forward with sliced weights, stack, mean)."""
    wc, bc, wfc, bfc = (params["conv_w"], params["conv_b"],
                        params["fc_w"], params["fc_b"])
    B, C, H, W = x.shape
    ch_full = wc.shape[0]
    if ensemble_num < 0:
        ensemble_num = int(1.0 / subnet_ratio)
    sub_ch = int(round(ch_full * subnet_ratio))
    patches = _im2col_3x3(x.astype(jnp.float32)).reshape(B, H * W, C * 9)

    all_logits = []
    for s in range(shift_idx, shift_idx + ensemble_num):
        lo = s * sub_ch
        wc_s = wc[lo:lo + sub_ch].reshape(sub_ch, C * 9)
        acts = jnp.einsum("bpk,ck->bpc", patches, wc_s) + bc[lo:lo + sub_ch]
        acts = jnp.maximum(acts, 0.0)
        h = jnp.mean(acts, axis=1)                                   # (B, sub_ch)
        logits = h @ wfc[:, lo:lo + sub_ch].T + bfc                  # (B, NC)
        all_logits.append(logits)
    stacked = jnp.stack(all_logits, axis=-1)
    return jnp.mean(stacked, axis=-1)


if __name__ == "__main__":
    key = jax.random.PRNGKey(0)
    B, C, H, W = 2, 4, 16, 16
    ch_full, num_classes = 32, 10
    subnet_ratio = 0.25  # -> ensemble_num = 4, each subnet uses 8 channels

    k1, k2, k3, k4, kx = jax.random.split(key, 5)
    params = {
        "conv_w": 0.1 * jax.random.normal(k1, (ch_full, C, 3, 3), jnp.float32),
        "conv_b": 0.1 * jax.random.normal(k2, (ch_full,), jnp.float32),
        "fc_w": 0.1 * jax.random.normal(k3, (num_classes, ch_full), jnp.float32),
        "fc_b": 0.1 * jax.random.normal(k4, (num_classes,), jnp.float32),
    }
    x = jax.random.normal(kx, (B, C, H, W), jnp.float32)

    # row_tile=128 -> grid (B=2, n_tiles=2): exercises the streamed pooling
    # accumulator (first/last grid steps) on the small demo shape.
    out = ensemble_subnet_forward(x, params, subnet_ratio=subnet_ratio,
                                  row_tile=128)
    out = jax.block_until_ready(out)

    ref = ensemble_subnet_reference(x, params, subnet_ratio=subnet_ratio)
    assert out.shape == (B, num_classes), out.shape
    # bf16 matmul operands (f32 accumulation) -> loosened tolerance vs f32 ref.
    assert jnp.allclose(out, ref, atol=2e-2, rtol=2e-2), (out, ref)

    print("KERNEL_OK")
</pallas_src>

<mosaic_0001>
module attributes {stable_mosaic.version = 11 : i64} {
  func.func @_ensemble_subnet_kernel(%arg0: i32, %arg1: i32, %arg2: memref<128x128xbf16, #tpu.memory_space<vmem>>, %arg3: memref<128x128xbf16, #tpu.memory_space<vmem>>, %arg4: memref<1x128xf32, #tpu.memory_space<vmem>>, %arg5: memref<128x128xbf16, #tpu.memory_space<vmem>>, %arg6: memref<1x128xf32, #tpu.memory_space<vmem>>, %arg7: memref<1x8x128xf32, #tpu.memory_space<vmem>>, %arg8: memref<8x128xf32, #tpu.memory_space<vmem>>) attributes {dimension_semantics = [#tpu.dimension_semantics<parallel>, #tpu.dimension_semantics<arbitrary>], iteration_bounds = array<i64: 2, 2>, scalar_prefetch = 0 : i64, scratch_operands = 1 : i64, tpu.core_type = #tpu.core_type<tc>, window_params = [{transform_indices = @transform_0, window_bounds = array<i64: 128, 128>}, {pipeline_mode = #tpu.pipeline_mode<synchronous>, transform_indices = @transform_1, window_bounds = array<i64: 128, 128>}, {pipeline_mode = #tpu.pipeline_mode<synchronous>, transform_indices = @transform_2, window_bounds = array<i64: 1, 128>}, {pipeline_mode = #tpu.pipeline_mode<synchronous>, transform_indices = @transform_3, window_bounds = array<i64: 128, 128>}, {pipeline_mode = #tpu.pipeline_mode<synchronous>, transform_indices = @transform_4, window_bounds = array<i64: 1, 128>}, {transform_indices = @transform_5, window_bounds = array<i64: 1, 8, 128>}]} {
    %c0_i32 = arith.constant 0 : i32
    %0 = arith.cmpi eq, %arg1, %c0_i32 : i32
    %1 = arith.extui %0 : i1 to i32
    %c0_i32_0 = arith.constant 0 : i32
    %2 = arith.cmpi ne, %1, %c0_i32_0 : i32
    scf.if %2 {
      %cst_13 = arith.constant 0.000000e+00 : f32
      %19 = vector.broadcast %cst_13 : f32 to vector<8x128xf32>
      %c0_14 = arith.constant 0 : index
      %c0_15 = arith.constant 0 : index
      %20 = vector.load %arg8[%c0_14, %c0_15] : memref<8x128xf32, #tpu.memory_space<vmem>>, vector<8x128xf32>
      tpu.vector_store %arg8[%c0_14, %c0_15], %19 {strides = array<i32>} : memref<8x128xf32, #tpu.memory_space<vmem>>, vector<8x128xf32>,
    } else {
    }
    %c0 = arith.constant 0 : index
    %c0_1 = arith.constant 0 : index
    %3 = vector.load %arg2[%c0, %c0_1] : memref<128x128xbf16, #tpu.memory_space<vmem>>, vector<128x128xbf16>
    %c0_2 = arith.constant 0 : index
    %c0_3 = arith.constant 0 : index
    %4 = vector.load %arg3[%c0_2, %c0_3] : memref<128x128xbf16, #tpu.memory_space<vmem>>, vector<128x128xbf16>
    %cst = arith.constant dense<0.000000e+00> : vector<128x128xf32>
    %5 = tpu.matmul %3, %4, %cst {dimension_numbers = #tpu.dot_dimension_numbers<[1], [0], [0], [1], [0, 0, 1, 1], [], []>} : vector<128x128xbf16>, vector<128x128xbf16>, vector<128x128xf32> -> vector<128x128xf32>
    %c0_4 = arith.constant 0 : index
    %c0_5 = arith.constant 0 : index
    %6 = vector.load %arg4[%c0_4, %c0_5] : memref<1x128xf32, #tpu.memory_space<vmem>>, vector<1x128xf32>
    %7 = vector.broadcast %6 : vector<1x128xf32> to vector<128x128xf32>
    %8 = arith.addf %5, %7 : vector<128x128xf32>
    %cst_6 = arith.constant 0.000000e+00 : f32
    %9 = vector.broadcast %cst_6 : f32 to vector<128x128xf32>
    %10 = arith.maximumf %8, %9 : vector<128x128xf32>
    %c0_7 = arith.constant 0 : index
    %c0_8 = arith.constant 0 : index
    %11 = vector.load %arg8[%c0_7, %c0_8] : memref<8x128xf32, #tpu.memory_space<vmem>>, vector<1x128xf32>
    %cst_9 = arith.constant dense<0.000000e+00> : vector<128xf32>
    %12 = vector.multi_reduction <add>, %10, %cst_9 [0] : vector<128x128xf32> to vector<128xf32>
    %13 = vector.shape_cast %12 : vector<128xf32> to vector<1x128xf32>
    %14 = arith.addf %11, %13 : vector<1x128xf32>
    %c0_10 = arith.constant 0 : index
    %c0_11 = arith.constant 0 : index
    %15 = vector.load %arg8[%c0_10, %c0_11] : memref<8x128xf32, #tpu.memory_space<vmem>>, vector<1x128xf32>
    tpu.vector_store %arg8[%c0_10, %c0_11], %14 {strides = array<i32>} : memref<8x128xf32, #tpu.memory_space<vmem>>, vector<1x128xf32>,
    %c1_i32 = arith.constant 1 : i32
    %16 = arith.cmpi eq, %arg1, %c1_i32 : i32
    %17 = arith.extui %16 : i1 to i32
    %c0_i32_12 = arith.constant 0 : i32
    %18 = arith.cmpi ne, %17, %c0_i32_12 : i32
    scf.if %18 {
      %c0_13 = arith.constant 0 : index
      %c0_14 = arith.constant 0 : index
      %19 = vector.load %arg8[%c0_13, %c0_14] : memref<8x128xf32, #tpu.memory_space<vmem>>, vector<1x128xf32>
      %cst_15 = arith.constant 3.906250e-03 : f32
      %20 = vector.broadcast %cst_15 : f32 to vector<1x128xf32>
      %21 = arith.mulf %19, %20 : vector<1x128xf32>
      %22 = arith.truncf %21 : vector<1x128xf32> to vector<1x128xbf16>
      %c0_16 = arith.constant 0 : index
      %c0_17 = arith.constant 0 : index
      %23 = vector.load %arg5[%c0_16, %c0_17] : memref<128x128xbf16, #tpu.memory_space<vmem>>, vector<128x128xbf16>
      %cst_18 = arith.constant dense<0.000000e+00> : vector<1x128xf32>
      %24 = tpu.matmul %22, %23, %cst_18 {dimension_numbers = #tpu.dot_dimension_numbers<[1], [0], [0], [1], [0, 0, 1, 1], [], []>} : vector<1x128xbf16>, vector<128x128xbf16>, vector<1x128xf32> -> vector<1x128xf32>
      %cst_19 = arith.constant 2.500000e-01 : f32
      %25 = vector.broadcast %cst_19 : f32 to vector<1x128xf32>
      %26 = arith.mulf %24, %25 : vector<1x128xf32>
      %c0_20 = arith.constant 0 : index
      %c0_21 = arith.constant 0 : index
      %27 = vector.load %arg6[%c0_20, %c0_21] : memref<1x128xf32, #tpu.memory_space<vmem>>, vector<1x128xf32>
      %28 = arith.addf %26, %27 : vector<1x128xf32>
      %29 = vector.shape_cast %28 : vector<1x128xf32> to vector<1x1x128xf32>
      %30 = vector.shape_cast %29 : vector<1x1x128xf32> to vector<1x1x128xf32>
      %31 = vector.broadcast %30 : vector<1x1x128xf32> to vector<1x8x128xf32>
      %c0_22 = arith.constant 0 : index
      %c0_23 = arith.constant 0 : index
      %c0_24 = arith.constant 0 : index
      %32 = vector.load %arg7[%c0_22, %c0_23, %c0_24] : memref<1x8x128xf32, #tpu.memory_space<vmem>>, vector<1x8x128xf32>
      tpu.vector_store %arg7[%c0_22, %c0_23, %c0_24], %31 {strides = array<i32>} : memref<1x8x128xf32, #tpu.memory_space<vmem>>, vector<1x8x128xf32>,
    } else {
    }
    return
  }
  func.func @transform_0(%arg0: i32, %arg1: i32) -> (i32, i32) {
    %c2_i32 = arith.constant 2 : i32
    %0 = arith.muli %arg0, %c2_i32 : i32
    %1 = arith.addi %0, %arg1 : i32
    %c0_i32 = arith.constant 0 : i32
    %c0_i32_0 = arith.constant 0 : i32
    return %1, %c0_i32 : i32, i32
  }
  func.func @transform_1(%arg0: i32, %arg1: i32) -> (i32, i32) {
    %c0_i32 = arith.constant 0 : i32
    %c0_i32_0 = arith.constant 0 : i32
    %c0_i32_1 = arith.constant 0 : i32
    return %c0_i32, %c0_i32_0 : i32, i32
  }
  func.func @transform_2(%arg0: i32, %arg1: i32) -> (i32, i32) {
    %c0_i32 = arith.constant 0 : i32
    %c0_i32_0 = arith.constant 0 : i32
    %c0_i32_1 = arith.constant 0 : i32
    return %c0_i32, %c0_i32_0 : i32, i32
  }
  func.func @transform_3(%arg0: i32, %arg1: i32) -> (i32, i32) {
    %c0_i32 = arith.constant 0 : i32
    %c0_i32_0 = arith.constant 0 : i32
    %c0_i32_1 = arith.constant 0 : i32
    return %c0_i32, %c0_i32_0 : i32, i32
  }
  func.func @transform_4(%arg0: i32, %arg1: i32) -> (i32, i32) {
    %c0_i32 = arith.constant 0 : i32
    %c0_i32_0 = arith.constant 0 : i32
    %c0_i32_1 = arith.constant 0 : i32
    return %c0_i32, %c0_i32_0 : i32, i32
  }
  func.func @transform_5(%arg0: i32, %arg1: i32) -> (i32, i32, i32) {
    %c0_i32 = arith.constant 0 : i32
    %c0_i32_0 = arith.constant 0 : i32
    %c0_i32_1 = arith.constant 0 : i32
    return %arg0, %c0_i32, %c0_i32_0 : i32, i32, i32
  }
}

</mosaic_0001>

<llo_original>
// kernel: tpu_custom_call.1
$region0: #{tpu_custom_call.1}
  #allocation0 [shape = 'u32[]', space=smem, size = 0x4, offset = 0x4, fixed_abs, tag = 'smem constant byte address 0x4 - core index']
  #allocation1 [shape = 'u32[72,128]{1,0:T(1,128)}', space=vmem, size = 0x9000, scoped, tag = 'internal scratch']
  #allocation2 [shape = 'f32[8,128]{1,0:T(8,128)}', space=vmem, size = 0x1000, scoped, tag = 'scratch operand']
  %s0 = inlined_call_operand.hbm [shape: bf16[512,128], index: 0, kind: input, shape index: {}]
  %s1 = inlined_call_operand.hbm [shape: bf16[128,128], index: 1, kind: input, shape index: {}]
  %s2 = inlined_call_operand.vmem [shape: f32[1,128], index: 2, kind: input, shape index: {}]
  %s3 = inlined_call_operand.hbm [shape: bf16[128,128], index: 3, kind: input, shape index: {}]
  %s4 = inlined_call_operand.vmem [shape: f32[1,128], index: 4, kind: input, shape index: {}]
  %s5 = inlined_call_operand.hbm [shape: f32[2,8,128], index: 5, kind: output, shape index: {}]
  %s6 = sld [smem:[#allocation0]]
  $region73: #{tpu_custom_call.1} parent=0
    _
  %s8 = ssub.s32 1, %s6
  %s9 = scalar_select 0, %s8, %s6
  $region1: #{tpu_custom_call.1} parent=0
    #allocation3 [shape = 'u8[65536]{0}', space=vmem, size = 0x10000, scoped, tag = 'input window, operand 0']
    #allocation4 [shape = 's32[2]{0}', space=sflag, size = 0x8, scoped, tag = 'scoped memory for tpu_custom_call.1']
    #allocation5 [shape = 's32[2]{0}', space=sflag, size = 0x8, scoped, tag = 'scoped memory for tpu_custom_call.1']
    #allocation6 [shape = 'u8[32768]{0}', space=vmem, size = 0x8000, scoped, tag = 'input window, operand 1, single buffered']
    #allocation7 [shape = 's32[1]{0}', space=sflag, size = 0x4, scoped, tag = 'scoped memory for tpu_custom_call.1']
    #allocation8 [shape = 'u8[32768]{0}', space=vmem, size = 0x8000, scoped, tag = 'input window, operand 3, single buffered']
    #allocation9 [shape = 'u8[8192]{0}', space=vmem, size = 0x2000, scoped, tag = 'output window, operand 0']
    %10 = vsyncpa [#allocation4], 0
    %s11 = scalar_lea.sflag [#allocation4], 1
    %12 = vsyncpa %s11, 0
    %13 = vsyncpa [#allocation7], 0
    %14 = vsyncpa [#allocation5], 0
    %s15 = scalar_lea.sflag [#allocation5], 1
    %16 = vsyncpa %s15, 0
    loop: start=0, step=1, limit=6
    $region2: #{tpu_custom_call.1} parent=1 // loop_pre_header
      _
    $region3: #{tpu_custom_call.1} parent=1 // loop_header
      %s18 = sphi 0, %s22
      %p19 = scmp.ge.s32.totalorder %s18, 6
      %s25 = sphi 0, %s37
      %s26 = sphi 0, %s33
      %s27 = sphi 0, %s25
      %s28 = sphi 0, %s26
      %s29 = sphi 0, %s27
      %s30 = sphi 0, %s28
      %s44 = sphi 0, %s46
      %s47 = sphi 0, %s44
      %s48 = sphi 0, %s47
      %s64 = sphi 0, %s48
      %s68 = sphi 0, %s68
      %s70 = sphi 0, %s68
      %s71 = sphi 0, %s70
      %s85 = sphi 0, %s71
      %s89 = sphi 0, %s89
      %s91 = sphi 0, %s89
      %s92 = sphi 0, %s91
      %s106 = sphi 0, %s92
      %s110 = sphi 0, %s110
      %s112 = sphi 0, %s110
      %s113 = sphi 0, %s112
      %s127 = sphi 0, %s113
      %s131 = sphi 0, %s131
      %s133 = sphi 0, %s131
      %s134 = sphi 0, %s133
      %s148 = sphi 0, %s134
      %s154 = sphi 0, %s156
      %s157 = sphi 0, %s154
      %s158 = sphi 0, %s157
      %s174 = sphi 0, %s158
    $region4: #{tpu_custom_call.1} parent=1 // loop_header_branch
      %21 = sbr.rel (%p19) target = $region8
    $region5: #{tpu_custom_call.1} parent=1 // loop_body
      %s23 = ssub.s32 %s18, 1
      %s24 = ssub.s32 %s18, 2
      %s31 = sadd.s32 1, %s26
      %p32 = scmp.ge.s32.totalorder %s31, 2
      %s33 = scalar_select %p32, 0, %s31
      %s34 = sadd.s32 1, %s25
      %s35 = scalar_select %p32, %s34, %s25
      %p36 = scmp.ge.s32.totalorder %s35, 2
      %s37 = scalar_select %p36, 0, %s35
      %s38 = smul.u32 %s25, 2
      %s39 = sadd.s32 %s38, %s26
      %s40 = smul.u32 %s37, 2
      %s41 = sadd.s32 %s40, %s33
      %s42 = ssub.s32 %s39, %s41
      %p43 = scmp.eq.s32.totalorder %s42, 0
      %s45 = sadd.s32 %s44, 1
      %s46 = scalar_select %p43, %s44, %s45
      %p49 = pneg %p43
      %p50 = scmp.eq.s32.totalorder %s18, 3
      %p51 = por %p49, %p50
      %p52 = scmp.ne.s32.totalorder %s44, %s47
      %p53 = scmp.eq.s32.totalorder %s18, 0
      %p54 = por %p52, %p53
      %p55 = scmp.ne.s32.totalorder %s44, %s47
      %p56 = scmp.eq.s32.totalorder %s23, 3
      %p57 = por %p55, %p56
      %p58 = scmp.ne.s32.totalorder %s47, %s48
      %p59 = scmp.eq.s32.totalorder %s23, 0
      %p60 = por %p58, %p59
      %p61 = scmp.ne.s32.totalorder %s47, %s48
      %p62 = scmp.eq.s32.totalorder %s24, 3
      %p63 = por %p61, %p62
      %p65 = scmp.ne.s32.totalorder %s48, %s64
      %p66 = scmp.eq.s32.totalorder %s24, 0
      %p67 = por %p65, %p66
      %s69 = sadd.s32 %s68, 1
      %p72 = scmp.eq.s32.totalorder %s18, 3
      %p73 = scmp.ne.s32.totalorder %s68, %s70
      %p74 = scmp.eq.s32.totalorder %s18, 0
      %p75 = por %p73, %p74
      %p76 = scmp.ne.s32.totalorder %s68, %s70
      %p77 = scmp.eq.s32.totalorder %s23, 3
      %p78 = por %p76, %p77
      %p79 = scmp.ne.s32.totalorder %s70, %s71
      %p80 = scmp.eq.s32.totalorder %s23, 0
      %p81 = por %p79, %p80
      %p82 = scmp.ne.s32.totalorder %s70, %s71
      %p83 = scmp.eq.s32.totalorder %s24, 3
      %p84 = por %p82, %p83
      %p86 = scmp.ne.s32.totalorder %s71, %s85
      %p87 = scmp.eq.s32.totalorder %s24, 0
      %p88 = por %p86, %p87
      %s90 = sadd.s32 %s89, 1
      %p93 = scmp.eq.s32.totalorder %s18, 3
      %p94 = scmp.ne.s32.totalorder %s89, %s91
      %p95 = scmp.eq.s32.totalorder %s18, 0
      %p96 = por %p94, %p95
      %p97 = scmp.ne.s32.totalorder %s89, %s91
      %p98 = scmp.eq.s32.totalorder %s23, 3
      %p99 = por %p97, %p98
      %p100 = scmp.ne.s32.totalorder %s91, %s92
      %p101 = scmp.eq.s32.totalorder %s23, 0
      %p102 = por %p100, %p101
      %p103 = scmp.ne.s32.totalorder %s91, %s92
      %p104 = scmp.eq.s32.totalorder %s24, 3
      %p105 = por %p103, %p104
      %p107 = scmp.ne.s32.totalorder %s92, %s106
      %p108 = scmp.eq.s32.totalorder %s24, 0
      %p109 = por %p107, %p108
      %s111 = sadd.s32 %s110, 1
      %p114 = scmp.eq.s32.totalorder %s18, 3
      %p115 = scmp.ne.s32.totalorder %s110, %s112
      %p116 = scmp.eq.s32.totalorder %s18, 0
      %p117 = por %p115, %p116
      %p118 = scmp.ne.s32.totalorder %s110, %s112
      %p119 = scmp.eq.s32.totalorder %s23, 3
      %p120 = por %p118, %p119
      %p121 = scmp.ne.s32.totalorder %s112, %s113
      %p122 = scmp.eq.s32.totalorder %s23, 0
      %p123 = por %p121, %p122
      %p124 = scmp.ne.s32.totalorder %s112, %s113
      %p125 = scmp.eq.s32.totalorder %s24, 3
      %p126 = por %p124, %p125
      %p128 = scmp.ne.s32.totalorder %s113, %s127
      %p129 = scmp.eq.s32.totalorder %s24, 0
      %p130 = por %p128, %p129
      %s132 = sadd.s32 %s131, 1
      %p135 = scmp.eq.s32.totalorder %s18, 3
      %p136 = scmp.ne.s32.totalorder %s131, %s133
      %p137 = scmp.eq.s32.totalorder %s18, 0
      %p138 = por %p136, %p137
      %p139 = scmp.ne.s32.totalorder %s131, %s133
      %p140 = scmp.eq.s32.totalorder %s23, 3
      %p141 = por %p139, %p140
      %p142 = scmp.ne.s32.totalorder %s133, %s134
      %p143 = scmp.eq.s32.totalorder %s23, 0
      %p144 = por %p142, %p143
      %p145 = scmp.ne.s32.totalorder %s133, %s134
      %p146 = scmp.eq.s32.totalorder %s24, 3
      %p147 = por %p145, %p146
      %p149 = scmp.ne.s32.totalorder %s134, %s148
      %p150 = scmp.eq.s32.totalorder %s24, 0
      %p151 = por %p149, %p150
      %s152 = ssub.s32 %s25, %s37
      %p153 = scmp.eq.s32.totalorder %s152, 0
      %s155 = sadd.s32 %s154, 1
      %s156 = scalar_select %p153, %s154, %s155
      %p159 = pneg %p153
      %p160 = scmp.eq.s32.totalorder %s18, 3
      %p161 = por %p159, %p160
      %p162 = scmp.ne.s32.totalorder %s154, %s157
      %p163 = scmp.eq.s32.totalorder %s18, 0
      %p164 = por %p162, %p163
      %p165 = scmp.ne.s32.totalorder %s154, %s157
      %p166 = scmp.eq.s32.totalorder %s23, 3
      %p167 = por %p165, %p166
      %p168 = scmp.ne.s32.totalorder %s157, %s158
      %p169 = scmp.eq.s32.totalorder %s23, 0
      %p170 = por %p168, %p169
      %p171 = scmp.ne.s32.totalorder %s157, %s158
      %p172 = scmp.eq.s32.totalorder %s24, 3
      %p173 = por %p171, %p172
      %p175 = scmp.ne.s32.totalorder %s158, %s174
      %p176 = scmp.eq.s32.totalorder %s24, 0
      %p177 = por %p175, %p176
      %p178 = scmp.le.s32.totalorder 1, %s18
      %p179 = scmp.lt.s32.totalorder %s18, 5
      %p180 = pnand %p178, %p179
      %p181 = pneg %p180
      // Predicated region
      $region9: #{tpu_custom_call.1} parent=5 // pred_check
        _
      $region10: #{tpu_custom_call.1} parent=5 // pred_check_branch
        %183 = sbr.rel (%p180) target = $region12
      $region11: #{tpu_custom_call.1} parent=5 // pred_region
        %s184 = ssub.s32 %s18, 1
        // Predicated region
        $region13: #{tpu_custom_call.1} parent=11 // pred_check
          %p185 = pneg %p81
        $region14: #{tpu_custom_call.1} parent=11 // pred_check_branch
          %187 = sbr.rel (%p185) target = $region16
        $region15: #{tpu_custom_call.1} parent=11 // pred_region
          %189 = vsyncadd [#allocation7], 0
          %s190 = sshll.u32 %s1, 4
          %s191 = int_to_ptr.hbm [resolvable:$true] %s190
          %s192 = sshll.u32 [#allocation6], 4
          %s193 = int_to_ptr.vmem [resolvable:$true] %s192
          %198 = dma.hbm_to_vmem [thread:$0]  %s191, 1024, %s193, [#allocation7], 64, 64, 4
        $region16: #{tpu_custom_call.1} parent=11 // pred_fallthru
          _
        // Predicated region
        $region17: #{tpu_custom_call.1} parent=11 // pred_check
          %p199 = pneg %p102
        $region18: #{tpu_custom_call.1} parent=11 // pred_check_branch
          %201 = sbr.rel (%p199) target = $region20
        $region19: #{tpu_custom_call.1} parent=11 // pred_region
          _
        $region20: #{tpu_custom_call.1} parent=11 // pred_fallthru
          _
        // Predicated region
        $region21: #{tpu_custom_call.1} parent=11 // pred_check
          %p202 = pneg %p123
        $region22: #{tpu_custom_call.1} parent=11 // pred_check_branch
          %204 = sbr.rel (%p202) target = $region24
        $region23: #{tpu_custom_call.1} parent=11 // pred_region
          %206 = vsyncadd [#allocation7], 0
          %s207 = sshll.u32 %s3, 4
          %s208 = int_to_ptr.hbm [resolvable:$true] %s207
          %s209 = sshll.u32 [#allocation8], 4
          %s210 = int_to_ptr.vmem [resolvable:$true] %s209
          %215 = dma.hbm_to_vmem [thread:$0]  %s208, 1024, %s210, [#allocation7], 64, 64, 4
        $region24: #{tpu_custom_call.1} parent=11 // pred_fallthru
          _
        // Predicated region
        $region25: #{tpu_custom_call.1} parent=11 // pred_check
          %p216 = pneg %p144
        $region26: #{tpu_custom_call.1} parent=11 // pred_check_branch
          %218 = sbr.rel (%p216) target = $region28
        $region27: #{tpu_custom_call.1} parent=11 // pred_region
          _
        $region28: #{tpu_custom_call.1} parent=11 // pred_fallthru
          _
      $region12: #{tpu_custom_call.1} parent=5 // pred_fallthru
        _
      %p219 = scmp.lt.s32.totalorder %s18, 4
      // Predicated region
      $region29: #{tpu_custom_call.1} parent=5 // pred_check
        %p220 = pneg %p219
      $region30: #{tpu_custom_call.1} parent=5 // pred_check_branch
        %222 = sbr.rel (%p220) target = $region32
      $region31: #{tpu_custom_call.1} parent=5 // pred_region
        // Predicated region
        $region33: #{tpu_custom_call.1} parent=31 // pred_check
          %p223 = pneg %p54
        $region34: #{tpu_custom_call.1} parent=31 // pred_check_branch
          %225 = sbr.rel (%p223) target = $region36
        $region35: #{tpu_custom_call.1} parent=31 // pred_region
          %s226 = sand.u32 %s44, 1
          %s227 = scalar_lea.sflag [#allocation4], %s226
          %s228 = sand.u32 %s44, 1
          %s229 = smul.addr %s228, 64
          %s230 = scalar_lea.vmem [#allocation3], %s229
          %s231 = smul.u32 %s25, 2
          %s232 = sadd.s32 %s231, %s26
          %s233 = smul.u32 16, %s232
          %235 = vsyncadd %s227, 0
          %s236 = smul.addr %s233, 4
          %s237 = scalar_lea.hbm %s0, %s236
          %s238 = sshll.u32 %s237, 4
          %s239 = int_to_ptr.hbm [resolvable:$true] %s238
          %s240 = sshll.u32 %s230, 4
          %s241 = int_to_ptr.vmem [resolvable:$true] %s240
          %246 = dma.hbm_to_vmem [thread:$0]  %s239, 1024, %s241, %s227, 64, 64, 4
        $region36: #{tpu_custom_call.1} parent=31 // pred_fallthru
          _
      $region32: #{tpu_custom_call.1} parent=5 // pred_fallthru
        _
      %p247 = scmp.le.s32.totalorder 1, %s18
      %p248 = scmp.lt.s32.totalorder %s18, 5
      %p249 = pnand %p247, %p248
      %p250 = pneg %p249
      // Predicated region
      $region37: #{tpu_custom_call.1} parent=5 // pred_check
        _
      $region38: #{tpu_custom_call.1} parent=5 // pred_check_branch
        %252 = sbr.rel (%p249) target = $region40
      $region39: #{tpu_custom_call.1} parent=5 // pred_region
        %s253 = ssub.s32 %s18, 1
        %s254 = sand.u32 %s47, 1
        %s255 = scalar_lea.sflag [#allocation4], %s254
        %s256 = sand.u32 %s47, 1
        %s257 = smul.addr %s256, 64
        %s258 = scalar_lea.vmem [#allocation3], %s257
        // Predicated region
        $region41: #{tpu_custom_call.1} parent=39 // pred_check
          %p259 = pneg %p60
        $region42: #{tpu_custom_call.1} parent=39 // pred_check_branch
          %261 = sbr.rel (%p259) target = $region44
        $region43: #{tpu_custom_call.1} parent=39 // pred_region
          %263 = dma.done %s255, 1024
        $region44: #{tpu_custom_call.1} parent=39 // pred_fallthru
          _
        // Predicated region
        $region45: #{tpu_custom_call.1} parent=39 // pred_check
          %p264 = pneg %p81
        $region46: #{tpu_custom_call.1} parent=39 // pred_check_branch
          %266 = sbr.rel (%p264) target = $region48
        $region47: #{tpu_custom_call.1} parent=39 // pred_region
          %268 = dma.done [#allocation7], 1024
        $region48: #{tpu_custom_call.1} parent=39 // pred_fallthru
          _
        // Predicated region
        $region49: #{tpu_custom_call.1} parent=39 // pred_check
          %p269 = pneg %p123
        $region50: #{tpu_custom_call.1} parent=39 // pred_check_branch
          %271 = sbr.rel (%p269) target = $region52
        $region51: #{tpu_custom_call.1} parent=39 // pred_region
          %273 = dma.done [#allocation7], 1024
        $region52: #{tpu_custom_call.1} parent=39 // pred_fallthru
          _
        %s274 = sand.u32 %s47, 1
        %s275 = scalar_lea.sflag [#allocation4], %s274
        %s276 = sand.u32 %s47, 1
        %s277 = smul.addr %s276, 64
        %s278 = scalar_lea.vmem [#allocation3], %s277
        %p279 = pneg %p60
        %p280 = pneg %p57
        %p281 = pneg %p81
        %p282 = pneg %p78
        %p283 = pneg %p102
        %p284 = pneg %p99
        %p285 = pneg %p123
        %p286 = pneg %p120
        %p287 = pneg %p144
        %p288 = pneg %p141
        %p289 = pneg %p170
        %p290 = pneg %p167
        %s291 = sand.u32 %s157, 1
        %s292 = scalar_lea.sflag [#allocation5], %s291
        %s293 = sand.u32 %s157, 1
        %s294 = smul.addr %s293, 8
        %s295 = scalar_lea.vmem [#allocation9], %s294
        %s296 = smul.u32 %s27, 2
        %s297 = sadd.s32 %s296, %s28
        %s298 = smul.u32 16, %s297
        %p299 = scmp.eq.s32.totalorder %s28, 0
        // Predicated region
        $region53: #{tpu_custom_call.1} parent=39 // pred_check
          %p300 = pneg %p299
        $region54: #{tpu_custom_call.1} parent=39 // pred_check_branch
          %302 = sbr.rel (%p300) target = $region56
        $region55: #{tpu_custom_call.1} parent=39 // pred_region
          %303 = vst [vmem:[#allocation2] sm:$0xff] 0.0
        $region56: #{tpu_custom_call.1} parent=39 // pred_fallthru
          _
        %v304 = vld [vmem:[%s258] sm:$0xf]
        %v305 = vld [vmem:[%s258 + $0x4] sm:$0xf]
        %v306 = vld [vmem:[%s258 + $0x8] sm:$0xf]
        %v307 = vld [vmem:[%s258 + $0xc] sm:$0xf]
        %v308 = vld [vmem:[%s258 + $0x10] sm:$0xf]
        %v309 = vld [vmem:[%s258 + $0x14] sm:$0xf]
        %v310 = vld [vmem:[%s258 + $0x18] sm:$0xf]
        %v311 = vld [vmem:[%s258 + $0x1c] sm:$0xf]
        %v312 = vld [vmem:[%s258 + $0x20] sm:$0xf]
        %v313 = vld [vmem:[%s258 + $0x24] sm:$0xf]
        %v314 = vld [vmem:[%s258 + $0x28] sm:$0xf]
        %v315 = vld [vmem:[%s258 + $0x2c] sm:$0xf]
        %v316 = vld [vmem:[%s258 + $0x30] sm:$0xf]
        %v317 = vld [vmem:[%s258 + $0x34] sm:$0xf]
        %v318 = vld [vmem:[%s258 + $0x38] sm:$0xf]
        %v319 = vld [vmem:[%s258 + $0x3c] sm:$0xf]
        %v320 = vld [vmem:[#allocation6] sm:$0xf]
        %v321 = vld [vmem:[#allocation6 + $0x4] sm:$0xf]
        %v322 = vld [vmem:[#allocation6 + $0x8] sm:$0xf]
        %v323 = vld [vmem:[#allocation6 + $0xc] sm:$0xf]
        %v324 = vld [vmem:[#allocation6 + $0x10] sm:$0xf]
        %v325 = vld [vmem:[#allocation6 + $0x14] sm:$0xf]
        %v326 = vld [vmem:[#allocation6 + $0x18] sm:$0xf]
        %v327 = vld [vmem:[#allocation6 + $0x1c] sm:$0xf]
        %v328 = vld [vmem:[#allocation6 + $0x20] sm:$0xf]
        %v329 = vld [vmem:[#allocation6 + $0x24] sm:$0xf]
        %v330 = vld [vmem:[#allocation6 + $0x28] sm:$0xf]
        %v331 = vld [vmem:[#allocation6 + $0x2c] sm:$0xf]
        %v332 = vld [vmem:[#allocation6 + $0x30] sm:$0xf]
        %v333 = vld [vmem:[#allocation6 + $0x34] sm:$0xf]
        %v334 = vld [vmem:[#allocation6 + $0x38] sm:$0xf]
        %v335 = vld [vmem:[#allocation6 + $0x3c] sm:$0xf]
        %v336 = vld [vmem:[%s2] sm:$0x1]
        %v338 = vperm.slane %v336, 0
        %v356 = vunpack.c.l.b16 %v304
        %v357 = vunpack.c.l.b16 %v305
        %v358 = vunpack.c.l.b16 %v306
        %v359 = vunpack.c.l.b16 %v307
        %v360 = vunpack.c.l.b16 %v308
        %v361 = vunpack.c.l.b16 %v309
        %v362 = vunpack.c.l.b16 %v310
        %v363 = vunpack.c.l.b16 %v311
        %v364 = vunpack.c.l.b16 %v312
        %v365 = vunpack.c.l.b16 %v313
        %v366 = vunpack.c.l.b16 %v314
        %v367 = vunpack.c.l.b16 %v315
        %v368 = vunpack.c.l.b16 %v316
        %v369 = vunpack.c.l.b16 %v317
        %v370 = vunpack.c.l.b16 %v318
        %v371 = vunpack.c.l.b16 %v319
        %v372 = vpack.c.b16 %v357, %v356
        %v373 = vpack.c.b16 %v359, %v358
        %v374 = vpack.c.b16 %v361, %v360
        %v375 = vpack.c.b16 %v363, %v362
        %v376 = vpack.c.b16 %v365, %v364
        %v377 = vpack.c.b16 %v367, %v366
        %v378 = vpack.c.b16 %v369, %v368
        %v379 = vpack.c.b16 %v371, %v370
        %v404 = vunpack.c.l.b16 %v320
        %v405 = vunpack.c.l.b16 %v321
        %v406 = vunpack.c.l.b16 %v322
        %v407 = vunpack.c.l.b16 %v323
        %v408 = vunpack.c.l.b16 %v324
        %v409 = vunpack.c.l.b16 %v325
        %v410 = vunpack.c.l.b16 %v326
        %v411 = vunpack.c.l.b16 %v327
        %v412 = vunpack.c.l.b16 %v328
        %v413 = vunpack.c.l.b16 %v329
        %v414 = vunpack.c.l.b16 %v330
        %v415 = vunpack.c.l.b16 %v331
        %v416 = vunpack.c.l.b16 %v332
        %v417 = vunpack.c.l.b16 %v333
        %v418 = vunpack.c.l.b16 %v334
        %v419 = vunpack.c.l.b16 %v335
        %v420 = vpack.c.b16 %v405, %v404
        %v421 = vpack.c.b16 %v407, %v406
        %v422 = vpack.c.b16 %v409, %v408
        %v423 = vpack.c.b16 %v411, %v410
        %v424 = vpack.c.b16 %v413, %v412
        %v425 = vpack.c.b16 %v415, %v414
        %v426 = vpack.c.b16 %v417, %v416
        %v427 = vpack.c.b16 %v419, %v418
        %436 = vmatpush.bf16.msra.mxu0 %v427
        %437 = vmatpush.bf16.msra.mxu0 %v426
        %438 = vmatpush.bf16.msra.mxu0 %v425
        %439 = vmatpush.bf16.msra.mxu0 %v424
        %440 = vmatpush.bf16.msra.mxu0 %v423
        %441 = vmatpush.bf16.msra.mxu0 %v422
        %442 = vmatpush.bf16.msra.mxu0 %v421
        %443 = vmatpush.bf16.msra.mxu0 %v420
        %444 = vmatmul.bf16.gmra.mxu0 %v372
        %v445 = vpop.f32.mrf.mxu0
        %v446 = vadd.f32 %v338, %v445
        %v447 = vpop.f32.mrf.mxu0
        %v448 = vadd.f32 %v338, %v447
        %449 = vmatmul.bf16.gmra.mxu0 %v373
        %v450 = vpop.f32.mrf.mxu0
        %v451 = vadd.f32 %v338, %v450
        %v452 = vpop.f32.mrf.mxu0
        %v453 = vadd.f32 %v338, %v452
        %454 = vmatmul.bf16.gmra.mxu0 %v374
        %v455 = vpop.f32.mrf.mxu0
        %v456 = vadd.f32 %v338, %v455
        %v457 = vpop.f32.mrf.mxu0
        %v458 = vadd.f32 %v338, %v457
        %459 = vmatmul.bf16.gmra.mxu0 %v375
        %v460 = vpop.f32.mrf.mxu0
        %v461 = vadd.f32 %v338, %v460
        %v462 = vpop.f32.mrf.mxu0
        %v463 = vadd.f32 %v338, %v462
        %464 = vmatmul.bf16.gmra.mxu0 %v376
        %v465 = vpop.f32.mrf.mxu0
        %v466 = vadd.f32 %v338, %v465
        %v467 = vpop.f32.mrf.mxu0
        %v468 = vadd.f32 %v338, %v467
        %469 = vmatmul.bf16.gmra.mxu0 %v377
        %v470 = vpop.f32.mrf.mxu0
        %v471 = vadd.f32 %v338, %v470
        %v472 = vpop.f32.mrf.mxu0
        %v473 = vadd.f32 %v338, %v472
        %474 = vmatmul.bf16.gmra.mxu0 %v378
        %v475 = vpop.f32.mrf.mxu0
        %v476 = vadd.f32 %v338, %v475
        %v477 = vpop.f32.mrf.mxu0
        %v478 = vadd.f32 %v338, %v477
        %479 = vmatmul.bf16.gmra.mxu0 %v379
        %v480 = vpop.f32.mrf.mxu0
        %v481 = vadd.f32 %v338, %v480
        %v482 = vpop.f32.mrf.mxu0
        %v483 = vadd.f32 %v338, %v482
        %484 = vdwg.mxu0
        %v485 = vmax.f32 %v446, 0.0
        %v486 = vmax.f32 %v448, 0.0
        %v487 = vmax.f32 %v451, 0.0
        %v488 = vmax.f32 %v453, 0.0
        %v489 = vmax.f32 %v456, 0.0
        %v490 = vmax.f32 %v458, 0.0
        %v491 = vmax.f32 %v461, 0.0
        %v492 = vmax.f32 %v463, 0.0
        %v493 = vmax.f32 %v466, 0.0
        %v494 = vmax.f32 %v468, 0.0
        %v495 = vmax.f32 %v471, 0.0
        %v496 = vmax.f32 %v473, 0.0
        %v497 = vmax.f32 %v476, 0.0
        %v498 = vmax.f32 %v478, 0.0
        %v499 = vmax.f32 %v481, 0.0
        %v500 = vmax.f32 %v483, 0.0
        %v501 = vld [vmem:[#allocation2] sm:$0x1]
        %v502 = vadd.f32 %v485, %v486
        %v503 = vadd.f32 %v502, %v487
        %v504 = vadd.f32 %v503, %v488
        %v505 = vadd.f32 %v504, %v489
        %v506 = vadd.f32 %v505, %v490
        %v507 = vadd.f32 %v506, %v491
        %v508 = vadd.f32 %v507, %v492
        %v509 = vadd.f32 %v508, %v493
        %v510 = vadd.f32 %v509, %v494
        %v511 = vadd.f32 %v510, %v495
        %v512 = vadd.f32 %v511, %v496
        %v513 = vadd.f32 %v512, %v497
        %v514 = vadd.f32 %v513, %v498
        %v515 = vadd.f32 %v514, %v499
        %v516 = vadd.f32 %v515, %v500
        %v517 = vrot.slane %v516, 4
        %v518 = vadd.f32 %v516, %v517
        %v519 = vrot.slane %v518, 2
        %v520 = vadd.f32 %v518, %v519
        %v521 = vrot.slane %v520, 1
        %v522 = vadd.f32 %v520, %v521
        %v523 = vadd.f32 %v501, %v522
        %524 = vst [vmem:[#allocation2] sm:$0x1] %v523
        %p525 = scmp.eq.s32.totalorder %s28, 1
        // Predicated region
        $region57: #{tpu_custom_call.1} parent=39 // pred_check
          %p526 = pneg %p525
        $region58: #{tpu_custom_call.1} parent=39 // pred_check_branch
          %528 = sbr.rel (%p526) target = $region60
        $region59: #{tpu_custom_call.1} parent=39 // pred_region
          %v529 = vld [vmem:[#allocation2] sm:$0x1]
          %v530 = vmul.f32 %v529, 0.00390625
          %v531 = vpack.c.bf16 %v530, %v530
          %v532 = vld [vmem:[#allocation8] sm:$0xf]
          %v533 = vld [vmem:[#allocation8 + $0x4] sm:$0xf]
          %v534 = vld [vmem:[#allocation8 + $0x8] sm:$0xf]
          %v535 = vld [vmem:[#allocation8 + $0xc] sm:$0xf]
          %v536 = vld [vmem:[#allocation8 + $0x10] sm:$0xf]
          %v537 = vld [vmem:[#allocation8 + $0x14] sm:$0xf]
          %v538 = vld [vmem:[#allocation8 + $0x18] sm:$0xf]
          %v539 = vld [vmem:[#allocation8 + $0x1c] sm:$0xf]
          %v540 = vld [vmem:[#allocation8 + $0x20] sm:$0xf]
          %v541 = vld [vmem:[#allocation8 + $0x24] sm:$0xf]
          %v542 = vld [vmem:[#allocation8 + $0x28] sm:$0xf]
          %v543 = vld [vmem:[#allocation8 + $0x2c] sm:$0xf]
          %v544 = vld [vmem:[#allocation8 + $0x30] sm:$0xf]
          %v545 = vld [vmem:[#allocation8 + $0x34] sm:$0xf]
          %v546 = vld [vmem:[#allocation8 + $0x38] sm:$0xf]
          %v547 = vld [vmem:[#allocation8 + $0x3c] sm:$0xf]
          %v564 = vunpack.c.l.b16 %v532
          %v565 = vunpack.c.l.b16 %v533
          %v566 = vunpack.c.l.b16 %v534
          %v567 = vunpack.c.l.b16 %v535
          %v568 = vunpack.c.l.b16 %v536
          %v569 = vunpack.c.l.b16 %v537
          %v570 = vunpack.c.l.b16 %v538
          %v571 = vunpack.c.l.b16 %v539
          %v572 = vunpack.c.l.b16 %v540
          %v573 = vunpack.c.l.b16 %v541
          %v574 = vunpack.c.l.b16 %v542
          %v575 = vunpack.c.l.b16 %v543
          %v576 = vunpack.c.l.b16 %v544
          %v577 = vunpack.c.l.b16 %v545
          %v578 = vunpack.c.l.b16 %v546
          %v579 = vunpack.c.l.b16 %v547
          %v580 = vpack.c.b16 %v565, %v564
          %v581 = vpack.c.b16 %v567, %v566
          %v582 = vpack.c.b16 %v569, %v568
          %v583 = vpack.c.b16 %v571, %v570
          %v584 = vpack.c.b16 %v573, %v572
          %v585 = vpack.c.b16 %v575, %v574
          %v586 = vpack.c.b16 %v577, %v576
          %v587 = vpack.c.b16 %v579, %v578
          %596 = vmatpush.bf16.msra.mxu0 %v587
          %597 = vmatpush.bf16.msra.mxu0 %v586
          %598 = vmatpush.bf16.msra.mxu0 %v585
          %599 = vmatpush.bf16.msra.mxu0 %v584
          %600 = vmatpush.bf16.msra.mxu0 %v583
          %601 = vmatpush.bf16.msra.mxu0 %v582
          %602 = vmatpush.bf16.msra.mxu0 %v581
          %603 = vmatpush.bf16.msra.mxu0 %v580
          %604 = vmatmul.bf16.gmra.mxu0 %v531
          %v605 = vpop.f32.mrf.mxu0
          %v606 = vadd.f32 0.0, %v605
          %v607 = vpop.f32.mrf.mxu0
          %608 = vdwg.mxu0
          %v609 = vmul.f32 %v606, 0.25
          %v610 = vld [vmem:[%s4] sm:$0x1]
          %v611 = vadd.f32 %v609, %v610
          %v612 = vperm.slane %v611, 0
          %613 = vst [vmem:[%s295] sm:$0xff] %v612
        $region60: #{tpu_custom_call.1} parent=39 // pred_fallthru
          _
        %s614 = sand.u32 %s157, 1
        %s615 = scalar_lea.sflag [#allocation5], %s614
        %s616 = sand.u32 %s157, 1
        %s617 = smul.addr %s616, 8
        %s618 = scalar_lea.vmem [#allocation9], %s617
        // Predicated region
        $region61: #{tpu_custom_call.1} parent=39 // pred_check
          %p619 = pneg %p167
        $region62: #{tpu_custom_call.1} parent=39 // pred_check_branch
          %621 = sbr.rel (%p619) target = $region64
        $region63: #{tpu_custom_call.1} parent=39 // pred_region
          %623 = vsyncadd %s615, 0
          %s624 = smul.addr %s27, 8
          %s625 = scalar_lea.hbm %s5, %s624
          %s627 = sshll.u32 %s618, 4
          %s628 = int_to_ptr.vmem [resolvable:$true] %s627
          %s629 = sshll.u32 %s625, 4
          %s630 = int_to_ptr.hbm [resolvable:$true] %s629
          %632 = dma.vmem_to_hbm [thread:$0]  %s628, 128, %s630, %s615
        $region64: #{tpu_custom_call.1} parent=39 // pred_fallthru
          _
      $region40: #{tpu_custom_call.1} parent=5 // pred_fallthru
        _
      %p633 = scmp.le.s32.totalorder 2, %s18
      // Predicated region
      $region65: #{tpu_custom_call.1} parent=5 // pred_check
        %p634 = pneg %p633
      $region66: #{tpu_custom_call.1} parent=5 // pred_check_branch
        %636 = sbr.rel (%p634) target = $region68
      $region67: #{tpu_custom_call.1} parent=5 // pred_region
        %s637 = ssub.s32 %s18, 2
        // Predicated region
        $region69: #{tpu_custom_call.1} parent=67 // pred_check
          %p638 = pneg %p173
        $region70: #{tpu_custom_call.1} parent=67 // pred_check_branch
          %640 = sbr.rel (%p638) target = $region72
        $region71: #{tpu_custom_call.1} parent=67 // pred_region
          %s641 = sand.u32 %s158, 1
          %s642 = scalar_lea.sflag [#allocation5], %s641
          %s643 = sand.u32 %s158, 1
          %s644 = smul.addr %s643, 8
          %s645 = scalar_lea.vmem [#allocation9], %s644
          %647 = dma.done %s642, 128
        $region72: #{tpu_custom_call.1} parent=67 // pred_fallthru
          _
      $region68: #{tpu_custom_call.1} parent=5 // pred_fallthru
        _
    $region6: #{tpu_custom_call.1} parent=1 // loop_footer
      %s22 = sadd.s32 1, %s18
    $region7: #{tpu_custom_call.1} parent=1 // loop_footer_branch
      %17 = sbr.rel target = $region3
    $region8: #{tpu_custom_call.1} parent=1 // loop_exit
      _
    %648 = vsyncpa [#allocation4], 1
    %s649 = scalar_lea.sflag [#allocation4], 1
    %650 = vsyncpa %s649, 1
    %651 = vsyncpa [#allocation7], 1
    %652 = vsyncpa [#allocation5], 1
    %s653 = scalar_lea.sflag [#allocation5], 1
    %654 = vsyncpa %s653, 1

</llo_original>
